<compile_context>
chip_gen: v7x
topology: tpu7x:2x2x1
jax: 0.10.0
libtpu: 0.0.40
codegen_flags: <defaults>
</compile_context>

<pallas_src>
import jax
import jax.numpy as jnp
from jax import lax
from jax.experimental import pallas as pl
from jax.experimental.pallas import tpu as pltpu

_LANE = 128
_SUBLANE = 8
_ACC_SHAPE = (_SUBLANE, _LANE)


def _floor_to(a: int, b: int) -> int:
    return (a // b) * b


def _ceil_div(a: int, b: int) -> int:
    return -(-a // b)


def _make_mse_partial_kernel(tile_m: int, chunk_rows: int):
    """Kernel computing a per-block partial sum of (x - t)^2 into an (8,128) acc."""
    n_full_chunks = tile_m // chunk_rows
    tail_rows = tile_m - n_full_chunks * chunk_rows  # static, multiple of 8

    def kernel(x_ref, t_ref, acc_ref):
        # acc_ref's block index is constant over the (single, "arbitrary") grid
        # axis -> it stays resident in VMEM and acts as a vector accumulator.
        @pl.when(pl.program_id(0) == 0)
        def _init():
            acc_ref[...] = jnp.zeros_like(acc_ref)

        def _chunk_sum(row0, rows):
            xs = x_ref[pl.ds(row0, rows), :].astype(jnp.float32)
            ts = t_ref[pl.ds(row0, rows), :].astype(jnp.float32)
            d = xs - ts
            dd = d * d
            # Fold (rows, 128) -> (8, 128) with plain VPU adds over sublane groups.
            return jnp.sum(dd.reshape(rows // _SUBLANE, _SUBLANE, _LANE), axis=0)

        def body(j, acc):
            row0 = pl.multiple_of(j * chunk_rows, chunk_rows)
            return acc + _chunk_sum(row0, chunk_rows)

        acc = jnp.zeros(_ACC_SHAPE, jnp.float32)
        if n_full_chunks > 0:
            # Chunked accumulation bounds live vregs / avoids a multi-MiB
            # squared-diff intermediate; unroll only for short trip counts.
            acc = lax.fori_loop(0, n_full_chunks, body, acc,
                                unroll=(n_full_chunks <= 8))
        if tail_rows:
            acc = acc + _chunk_sum(n_full_chunks * chunk_rows, tail_rows)

        acc_ref[...] = acc_ref[...] + acc

    return kernel


def _content_loss_impl(x, target, *, block_bytes: int = 4 * 1024 * 1024,
                       chunk_rows: int = 512):
    """Mimics ContentLoss.forward: returns (input_unchanged, mse_loss)."""
    assert x.shape == target.shape, "input and target must match (as in F.mse_loss)"
    total = int(x.size)
    if total == 0:
        return x, jnp.float32(0.0)

    itemsize = jnp.dtype(x.dtype).itemsize
    xf = x.reshape(-1)
    tf = target.reshape(-1)

    M = total // _LANE                       # full lane-dense rows
    lane_tail = total - M * _LANE            # < 128 leftover elements

    # Sublane packing: 8 rows for 32-bit, 16 for bf16, 32 for 8-bit dtypes.
    sublane_mult = max(_SUBLANE, 32 // itemsize)
    # Byte-budgeted max rows per block (~4 MiB per input block regardless of dtype).
    max_rows = max(sublane_mult,
                   _floor_to(block_bytes // (_LANE * itemsize), sublane_mult))

    kernel_sum = jnp.float32(0.0)
    covered_elems = 0

    if M >= sublane_mult:
        if lane_tail == 0:
            x2 = xf.reshape(M, _LANE)        # zero-copy reshape (no jnp.pad!)
            t2 = tf.reshape(M, _LANE)
        else:
            # TODO(synk): this prefix slice materializes a copy for sizes that are
            # not multiples of 128; a 1-D blocked kernel with in-kernel masking
            # would avoid it. The aligned (common) case above is fully zero-copy.
            x2 = xf[: M * _LANE].reshape(M, _LANE)
            t2 = tf[: M * _LANE].reshape(M, _LANE)

        # Balance block count so the kernel covers almost all rows with FULL,
        # always-in-bounds blocks (remainder is only a few sublane groups).
        n_blocks = _ceil_div(M, max_rows)
        tile_m = max(sublane_mult, _floor_to(M // n_blocks, sublane_mult))
        full_blocks = M // tile_m
        covered_rows = full_blocks * tile_m
        covered_elems = covered_rows * _LANE

        cost = pl.CostEstimate(
            flops=3 * covered_elems,                       # sub, mul, add / element
            transcendentals=0,
            bytes_accessed=2 * covered_elems * itemsize + _SUBLANE * _LANE * 4,
        )

        partials = pl.pallas_call(
            _make_mse_partial_kernel(tile_m, chunk_rows),
            out_shape=jax.ShapeDtypeStruct(_ACC_SHAPE, jnp.float32),
            grid_spec=pltpu.PrefetchScalarGridSpec(
                num_scalar_prefetch=0,
                grid=(full_blocks,),
                in_specs=[
                    pl.BlockSpec((tile_m, _LANE), lambda i: (i, 0)),
                    pl.BlockSpec((tile_m, _LANE), lambda i: (i, 0)),
                ],
                out_specs=pl.BlockSpec(_ACC_SHAPE, lambda i: (0, 0)),
            ),
            compiler_params=pltpu.CompilerParams(
                dimension_semantics=("arbitrary",),
                vmem_limit_bytes=32 * 1024 * 1024,
            ),
            cost_estimate=cost,
        )(x2, t2)

        kernel_sum = jnp.sum(partials)

    # Small ragged remainder (leftover rows + sub-128 tail): plain jnp.
    if covered_elems < total:
        xr = xf[covered_elems:].astype(jnp.float32)
        tr = tf[covered_elems:].astype(jnp.float32)
        dr = xr - tr
        extra = jnp.sum(dr * dr)
    else:
        extra = jnp.float32(0.0)

    loss = (kernel_sum + extra) / jnp.float32(total)
    # forward returns the input unchanged (identity pass-through).
    return x, loss


@jax.custom_vjp
def content_loss_forward(x, target):
    return _content_loss_impl(x, target)


def _content_loss_fwd(x, target):
    out = _content_loss_impl(x, target)
    return out, (x, target)


def _content_loss_bwd(residuals, cotangents):
    x, target = residuals
    g_out, g_loss = cotangents
    n = x.size
    # d(mse)/dx = 2*(x - target)/N ; the pass-through output contributes g_out.
    diff = (x.astype(jnp.float32) - target.astype(jnp.float32)) * (2.0 / n)
    gx = (g_out.astype(jnp.float32) + g_loss * diff).astype(x.dtype)
    gt = (-(g_loss * diff)).astype(target.dtype)
    return gx, gt


content_loss_forward.defvjp(_content_loss_fwd, _content_loss_bwd)


if __name__ == "__main__":
    key = jax.random.PRNGKey(0)
    k_in, k_tgt = jax.random.split(key)

    # Small shapes consistent with an NCHW feature map: batch=2, channels=4, 16x16.
    x = jax.random.normal(k_in, (2, 4, 16, 16), dtype=jnp.float32)
    target = jax.random.normal(k_tgt, (2, 4, 16, 16), dtype=jnp.float32)

    out, loss = content_loss_forward(x, target)
    out, loss = jax.block_until_ready((out, loss))

    # Reference check (F.mse_loss default reduction='mean' over all elements).
    ref_loss = jnp.mean((x - target) ** 2)
    assert jnp.allclose(loss, ref_loss, rtol=1e-5, atol=1e-6), (loss, ref_loss)
    assert jnp.array_equal(out, x), "forward must return input unchanged"

    # Custom-VJP smoke test (ContentLoss must be differentiable w.r.t. the input).
    g = jax.grad(lambda xx: content_loss_forward(xx, target)[1])(x)
    g = jax.block_until_ready(g)
    g_ref = 2.0 * (x - target) / x.size
    assert jnp.allclose(g, g_ref, rtol=1e-5, atol=1e-6)

    print("KERNEL_OK")
</pallas_src>

<mosaic_0001>
module attributes {stable_mosaic.version = 11 : i64} {
  func.func @kernel(%arg0: i32, %arg1: memref<16x128xf32, #tpu.memory_space<vmem>>, %arg2: memref<16x128xf32, #tpu.memory_space<vmem>>, %arg3: memref<8x128xf32, #tpu.memory_space<vmem>>) attributes {dimension_semantics = [#tpu.dimension_semantics<arbitrary>], iteration_bounds = array<i64: 1>, scalar_prefetch = 0 : i64, scratch_operands = 0 : i64, tpu.core_type = #tpu.core_type<tc>, window_params = [{transform_indices = @transform_0, window_bounds = array<i64: 16, 128>}, {transform_indices = @transform_1, window_bounds = array<i64: 16, 128>}, {pipeline_mode = #tpu.pipeline_mode<synchronous>, transform_indices = @transform_2, window_bounds = array<i64: 8, 128>}]} {
    %c0_i32 = arith.constant 0 : i32
    %0 = arith.cmpi eq, %arg0, %c0_i32 : i32
    %1 = arith.extui %0 : i1 to i32
    %c0_i32_0 = arith.constant 0 : i32
    %2 = arith.cmpi ne, %1, %c0_i32_0 : i32
    scf.if %2 {
      %cst_9 = arith.constant 0.000000e+00 : f32
      %14 = vector.broadcast %cst_9 : f32 to vector<8x128xf32>
      %c0_10 = arith.constant 0 : index
      %c0_11 = arith.constant 0 : index
      %15 = vector.load %arg3[%c0_10, %c0_11] : memref<8x128xf32, #tpu.memory_space<vmem>>, vector<8x128xf32>
      tpu.vector_store %arg3[%c0_10, %c0_11], %14 {strides = array<i32>} : memref<8x128xf32, #tpu.memory_space<vmem>>, vector<8x128xf32>,
    } else {
    }
    %cst = arith.constant 0.000000e+00 : f32
    %3 = vector.broadcast %cst : f32 to vector<8x128xf32>
    %c0 = arith.constant 0 : index
    %c0_1 = arith.constant 0 : index
    %4 = vector.load %arg1[%c0, %c0_1] : memref<16x128xf32, #tpu.memory_space<vmem>>, vector<16x128xf32>
    %c0_2 = arith.constant 0 : index
    %c0_3 = arith.constant 0 : index
    %5 = vector.load %arg2[%c0_2, %c0_3] : memref<16x128xf32, #tpu.memory_space<vmem>>, vector<16x128xf32>
    %6 = arith.subf %4, %5 : vector<16x128xf32>
    %7 = arith.mulf %6, %6 : vector<16x128xf32>
    %8 = vector.shape_cast %7 : vector<16x128xf32> to vector<2x8x128xf32>
    %cst_4 = arith.constant dense<0.000000e+00> : vector<8x128xf32>
    %9 = vector.multi_reduction <add>, %8, %cst_4 [0] : vector<2x8x128xf32> to vector<8x128xf32>
    %10 = arith.addf %3, %9 : vector<8x128xf32>
    %c0_5 = arith.constant 0 : index
    %c0_6 = arith.constant 0 : index
    %11 = vector.load %arg3[%c0_5, %c0_6] : memref<8x128xf32, #tpu.memory_space<vmem>>, vector<8x128xf32>
    %12 = arith.addf %11, %10 : vector<8x128xf32>
    %c0_7 = arith.constant 0 : index
    %c0_8 = arith.constant 0 : index
    %13 = vector.load %arg3[%c0_7, %c0_8] : memref<8x128xf32, #tpu.memory_space<vmem>>, vector<8x128xf32>
    tpu.vector_store %arg3[%c0_7, %c0_8], %12 {strides = array<i32>} : memref<8x128xf32, #tpu.memory_space<vmem>>, vector<8x128xf32>,
    return
  }
  func.func @transform_0(%arg0: i32) -> (i32, i32) {
    %c0_i32 = arith.constant 0 : i32
    %c0_i32_0 = arith.constant 0 : i32
    return %arg0, %c0_i32 : i32, i32
  }
  func.func @transform_1(%arg0: i32) -> (i32, i32) {
    %c0_i32 = arith.constant 0 : i32
    %c0_i32_0 = arith.constant 0 : i32
    return %arg0, %c0_i32 : i32, i32
  }
  func.func @transform_2(%arg0: i32) -> (i32, i32) {
    %c0_i32 = arith.constant 0 : i32
    %c0_i32_0 = arith.constant 0 : i32
    %c0_i32_1 = arith.constant 0 : i32
    return %c0_i32, %c0_i32_0 : i32, i32
  }
}

</mosaic_0001>

<llo_original>
// kernel: tpu_custom_call.1
$region0: #{tpu_custom_call.1}
  #allocation0 [shape = 'u32[]', space=smem, size = 0x4, offset = 0x4, fixed_abs, tag = 'smem constant byte address 0x4 - core index']
  #allocation1 [shape = 'u32[144,128]{1,0:T(1,128)}', space=vmem, size = 0x12000, scoped, tag = 'internal scratch']
  %s0 = inlined_call_operand.hbm [shape: f32[16,128], index: 0, kind: input, shape index: {}]
  %s1 = inlined_call_operand.hbm [shape: f32[16,128], index: 1, kind: input, shape index: {}]
  %s2 = inlined_call_operand.hbm [shape: f32[8,128], index: 2, kind: output, shape index: {}]
  %s3 = sld [smem:[#allocation0]]
  $region30: #{tpu_custom_call.1} parent=0
    _
  %s5 = ssub.s32 1, %s3
  %s6 = scalar_select 0, %s5, %s3
  $region1: #{tpu_custom_call.1} parent=0
    #allocation2 [shape = 'u8[8192]{0}', space=vmem, size = 0x2000, scoped, tag = 'input window, operand 0, single buffered']
    #allocation3 [shape = 's32[1]{0}', space=sflag, size = 0x4, scoped, tag = 'scoped memory for tpu_custom_call.1']
    #allocation4 [shape = 's32[1]{0}', space=sflag, size = 0x4, scoped, tag = 'scoped memory for tpu_custom_call.1']
    #allocation5 [shape = 'u8[8192]{0}', space=vmem, size = 0x2000, scoped, tag = 'input window, operand 1, single buffered']
    #allocation6 [shape = 's32[1]{0}', space=sflag, size = 0x4, scoped, tag = 'scoped memory for tpu_custom_call.1']
    #allocation7 [shape = 'u8[4096]{0}', space=vmem, size = 0x1000, scoped, tag = 'output window, operand 0, single buffered']
    %7 = vsyncpa [#allocation3], 0
    %8 = vsyncpa [#allocation6], 0
    %9 = vsyncpa [#allocation4], 0
    // Predicated region
    $region2: #{tpu_custom_call.1} parent=1 // pred_check
      _
    $region3: #{tpu_custom_call.1} parent=1 // pred_check_branch
      %11 = sbr.rel (0) target = $region5
    $region4: #{tpu_custom_call.1} parent=1 // pred_region
      %s13 = ssub.s32 256, 256
      %14 = vsyncadd [#allocation3], %s13
      %s15 = sshll.u32 [#allocation2], 4
      %s16 = int_to_ptr.vmem [resolvable:$true] %s15
      %21 = dma.hbm_to_vmem [thread:$0]  %s0, 256, %s16, [#allocation3], 128, 128, 8
    $region5: #{tpu_custom_call.1} parent=1 // pred_fallthru
      _
    // Predicated region
    $region6: #{tpu_custom_call.1} parent=1 // pred_check
      _
    $region7: #{tpu_custom_call.1} parent=1 // pred_check_branch
      %23 = sbr.rel (0) target = $region9
    $region8: #{tpu_custom_call.1} parent=1 // pred_region
      %s25 = ssub.s32 256, 256
      %26 = vsyncadd [#allocation6], %s25
      %s27 = sshll.u32 [#allocation5], 4
      %s28 = int_to_ptr.vmem [resolvable:$true] %s27
      %33 = dma.hbm_to_vmem [thread:$0]  %s1, 256, %s28, [#allocation6], 128, 128, 8
    $region9: #{tpu_custom_call.1} parent=1 // pred_fallthru
      _
    // Predicated region
    $region10: #{tpu_custom_call.1} parent=1 // pred_check
      _
    $region11: #{tpu_custom_call.1} parent=1 // pred_check_branch
      %35 = sbr.rel (0) target = $region13
    $region12: #{tpu_custom_call.1} parent=1 // pred_region
      %36 = dma.done [#allocation3], 256
    $region13: #{tpu_custom_call.1} parent=1 // pred_fallthru
      _
    // Predicated region
    $region14: #{tpu_custom_call.1} parent=1 // pred_check
      _
    $region15: #{tpu_custom_call.1} parent=1 // pred_check_branch
      %38 = sbr.rel (0) target = $region17
    $region16: #{tpu_custom_call.1} parent=1 // pred_region
      %39 = dma.done [#allocation6], 256
    $region17: #{tpu_custom_call.1} parent=1 // pred_fallthru
      _
    %p40 = scmp.eq.s32.totalorder 0, 0
    // Predicated region
    $region18: #{tpu_custom_call.1} parent=1 // pred_check
      %p41 = pneg %p40
    $region19: #{tpu_custom_call.1} parent=1 // pred_check_branch
      %43 = sbr.rel (%p41) target = $region21
    $region20: #{tpu_custom_call.1} parent=1 // pred_region
      %44 = vst [vmem:[#allocation7] sm:$0xff] 0.0
    $region21: #{tpu_custom_call.1} parent=1 // pred_fallthru
      _
    %v45 = vld [vmem:[#allocation2] sm:$0xff]
    %v46 = vld [vmem:[#allocation2 + $0x8] sm:$0xff]
    %v47 = vld [vmem:[#allocation5] sm:$0xff]
    %v48 = vld [vmem:[#allocation5 + $0x8] sm:$0xff]
    %v49 = vsub.f32 %v45, %v47
    %v50 = vsub.f32 %v46, %v48
    %v51 = vmul.f32 %v49, %v49
    %v52 = vmul.f32 %v50, %v50
    %v53 = vadd.f32 %v51, %v52
    %v54 = vadd.f32 %v53, 0.0
    %v55 = vld [vmem:[#allocation7] sm:$0xff]
    %v56 = vadd.f32 %v55, %v54
    %57 = vst [vmem:[#allocation7] sm:$0xff] %v56
    // Predicated region
    $region22: #{tpu_custom_call.1} parent=1 // pred_check
      _
    $region23: #{tpu_custom_call.1} parent=1 // pred_check_branch
      %59 = sbr.rel (0) target = $region25
    $region24: #{tpu_custom_call.1} parent=1 // pred_region
      %s61 = ssub.s32 128, 128
      %62 = vsyncadd [#allocation4], %s61
      %s64 = sshll.u32 [#allocation7], 4
      %s65 = int_to_ptr.vmem [resolvable:$true] %s64
      %67 = dma.vmem_to_hbm [thread:$0]  %s65, 128, %s2, [#allocation4]
    $region25: #{tpu_custom_call.1} parent=1 // pred_fallthru
      _
    // Predicated region
    $region26: #{tpu_custom_call.1} parent=1 // pred_check
      _
    $region27: #{tpu_custom_call.1} parent=1 // pred_check_branch
      %69 = sbr.rel (0) target = $region29
    $region28: #{tpu_custom_call.1} parent=1 // pred_region
      %70 = dma.done [#allocation4], 128
    $region29: #{tpu_custom_call.1} parent=1 // pred_fallthru
      _
    %71 = vsyncpa [#allocation3], 1
    %72 = vsyncpa [#allocation6], 1
    %73 = vsyncpa [#allocation4], 1

</llo_original>
